<compile_context>
chip_gen: v5e
topology: v5e:2x2
jax: 0.10.0
libtpu: 0.0.40
codegen_flags: <defaults>
</compile_context>

<pallas_src>
import functools

import jax
import jax.numpy as jnp
from jax import lax
from jax.experimental import pallas as pl
from jax.experimental.pallas import tpu as pltpu


def _round_up(x, m):
    return ((x + m - 1) // m) * m


def _supclu_kernel(fr_ref, fc_ref, lr_ref, lc_ref, out_ref,
                   m_sc, l_sc, psum_sc, pcnt_sc,
                   *, scale, n_valid, block_m, block_n):
    i = pl.program_id(0)   # anchor (row) block   — "parallel"
    j = pl.program_id(1)   # contrast (col) block — "arbitrary" reduction axis

    @pl.when(j == 0)
    def _():
        m_sc[...] = jnp.full((block_m, 1), -jnp.inf, dtype=jnp.float32)
        l_sc[...] = jnp.zeros((block_m, 1), dtype=jnp.float32)
        psum_sc[...] = jnp.zeros((block_m, 1), dtype=jnp.float32)
        pcnt_sc[...] = jnp.zeros((block_m, 1), dtype=jnp.float32)

    # (TM, TN) Gram tile on the MXU.  Operands are bf16 and pre-scaled by
    # sqrt(1/temperature) in the wrapper, so s == (f_i . f_j) / temperature.
    # Contract the last dim of both operands (no transpose), accumulate in f32.
    s = lax.dot_general(fr_ref[...], fc_ref[...],
                        dimension_numbers=(((1,), (1,)), ((), ())),
                        preferred_element_type=jnp.float32)      # (TM, TN) f32

    # Boolean masks: real (non-padded), non-self columns; positive pairs.
    gr = i * block_m + lax.broadcasted_iota(jnp.int32, (block_m, block_n), 0)
    gc = j * block_n + lax.broadcasted_iota(jnp.int32, (block_m, block_n), 1)
    col_ok = (gc < n_valid) & (gr != gc)
    pos = col_ok & (lr_ref[...] == lc_ref[...])

    # Online (flash-style) masked log-sum-exp + positive statistics.
    s_valid = jnp.where(col_ok, s, -jnp.inf)
    m_prev = m_sc[...]
    m_new = jnp.maximum(m_prev, jnp.max(s_valid, axis=1, keepdims=True))
    alpha = jnp.exp(m_prev - m_new)
    l_sc[...] = alpha * l_sc[...] + jnp.sum(jnp.exp(s_valid - m_new),
                                            axis=1, keepdims=True)
    psum_sc[...] += jnp.sum(jnp.where(pos, s, 0.0), axis=1, keepdims=True)
    pcnt_sc[...] += jnp.sum(pos.astype(jnp.float32), axis=1, keepdims=True)
    m_sc[...] = m_new

    @pl.when(j == pl.num_programs(1) - 1)
    def _():
        # mean_{j in pos} log_softmax_j = psum/n_pos - logsumexp_{k != i}
        # (the reference's per-row max subtraction cancels exactly here).
        lse = m_sc[...] + jnp.log(l_sc[...])
        mean_lp = psum_sc[...] * pl.reciprocal(pcnt_sc[...], approx=True) - lse
        r = i * block_m + lax.broadcasted_iota(jnp.int32, (block_m, 1), 0)
        out_ref[...] = jnp.where(r < n_valid, -scale * mean_lp, 0.0)


def supclu_loss(features, labels, temperature=0.3, base_temperature=0.07,
                block_size=128):
    """Pallas TPU SupCluLoss.forward(features, labels=labels), contrast_mode='all'.

    block_size=128 is safe on v5e/v6e/v7x (lane-dense, keeps row-padding waste
    low); bump to 256 on v6e/v7x for bigger Gram tiles / fewer contrast
    re-fetch passes if batch sizes are large multiples of 256.
    """
    B, D = features.shape
    if B < 2:
        raise ValueError("SupCluLoss needs at least 2 samples")

    inv_temp = 1.0 / float(temperature)
    # Single fused elementwise op: scale by sqrt(1/T) and quantise to the bf16
    # MXU-feed dtype.  The Gram tile then comes out of the MXU already /T with
    # the same single-bf16-rounding precision as an in-kernel cast would give.
    feats_q = (features.astype(jnp.float32)
               * jnp.float32(inv_temp ** 0.5)).astype(jnp.bfloat16)
    # Labels are assumed to be integer class ids (exact int32 comparison).
    labs = jnp.reshape(labels, (-1,)).astype(jnp.int32)

    blk = min(int(block_size), _round_up(B, 8))
    b_pad = _round_up(B, blk)
    if b_pad != B:
        feats_q = jnp.pad(feats_q, ((0, b_pad - B), (0, 0)))
        # Pad value is irrelevant: padded rows/cols are masked by global index.
        labs = jnp.pad(labs, (0, b_pad - B), constant_values=-1)

    lab_col = labs.reshape(b_pad, 1)   # anchor-row labels   (sublane layout)
    lab_row = labs.reshape(1, b_pad)   # contrast-col labels (lane layout)
    n_blk = b_pad // blk

    kernel = functools.partial(
        _supclu_kernel,
        scale=float(temperature / base_temperature),
        n_valid=B,
        block_m=blk,
        block_n=blk,
    )

    per_row = pl.pallas_call(
        kernel,
        out_shape=jax.ShapeDtypeStruct((b_pad, 1), jnp.float32),
        grid=(n_blk, n_blk),
        in_specs=[
            pl.BlockSpec((blk, D), lambda i, j: (i, 0)),   # anchor rows (bf16)
            pl.BlockSpec((blk, D), lambda i, j: (j, 0)),   # contrast rows (bf16)
            pl.BlockSpec((blk, 1), lambda i, j: (i, 0)),   # anchor labels (col)
            pl.BlockSpec((1, blk), lambda i, j: (0, j)),   # contrast labels (row)
        ],
        out_specs=pl.BlockSpec((blk, 1), lambda i, j: (i, 0)),
        scratch_shapes=[
            pltpu.VMEM((blk, 1), jnp.float32),   # running row max
            pltpu.VMEM((blk, 1), jnp.float32),   # running exp-sum (non-self)
            pltpu.VMEM((blk, 1), jnp.float32),   # sum of logits over positives
            pltpu.VMEM((blk, 1), jnp.float32),   # count of positives
        ],
        compiler_params=pltpu.CompilerParams(
            dimension_semantics=("parallel", "arbitrary"),
            vmem_limit_bytes=32 * 1024 * 1024,
        ),
        cost_estimate=pl.CostEstimate(
            flops=2 * b_pad * b_pad * D,
            transcendentals=b_pad * b_pad,
            # bf16 feature tiles: anchors streamed once, contrast n_blk times.
            bytes_accessed=2 * (n_blk + 1) * b_pad * D + 12 * b_pad,
        ),
    )(feats_q, feats_q, lab_col, lab_row)

    # per_row holds per-anchor losses (0 for padded rows); final mean over B.
    return jnp.sum(per_row) / B


def _supclu_loss_ref(features, labels, temperature=0.3, base_temperature=0.07):
    """Pure-JAX f32 reference mirroring the PyTorch forward (contrast_mode='all')."""
    B = features.shape[0]
    lab = labels.reshape(-1, 1)
    mask = jnp.equal(lab, lab.T).astype(jnp.float32)
    adc = (features @ features.T) / temperature
    logits = adc - jnp.max(adc, axis=1, keepdims=True)
    logits_mask = 1.0 - jnp.eye(B, dtype=jnp.float32)
    mask = mask * logits_mask
    exp_logits = jnp.exp(logits) * logits_mask
    log_prob = logits - jnp.log(exp_logits.sum(1, keepdims=True))
    mean_log_prob_pos = (mask * log_prob).sum(1) / mask.sum(1)
    loss = -(temperature / base_temperature) * mean_log_prob_pos
    return loss.mean()


if __name__ == "__main__":
    key = jax.random.PRNGKey(0)
    k1, k2 = jax.random.split(key)

    # Case 1: tiny batch -> single tile, no padding.
    B1, D1 = 8, 32
    f1 = jax.random.normal(k1, (B1, D1), dtype=jnp.float32)
    f1 = f1 / jnp.linalg.norm(f1, axis=1, keepdims=True)
    l1 = jnp.array([0, 0, 1, 1, 2, 2, 3, 3], dtype=jnp.int32)
    out1 = supclu_loss(f1, l1)
    jax.block_until_ready(out1)
    ref1 = _supclu_loss_ref(f1, l1)
    # bf16 MXU feed -> ~1e-2-level relative differences vs f32 reference.
    assert jnp.allclose(out1, ref1, atol=5e-2, rtol=5e-2), (out1, ref1)

    # Case 2: multi-tile grid with padding (B=160 pads to 256, grid (2, 2)).
    B2, D2 = 160, 64
    f2 = jax.random.normal(k2, (B2, D2), dtype=jnp.float32)
    f2 = f2 / jnp.linalg.norm(f2, axis=1, keepdims=True)
    l2 = jnp.arange(B2, dtype=jnp.int32) % 20   # 8 positives per class
    out2 = supclu_loss(f2, l2)
    jax.block_until_ready(out2)
    ref2 = _supclu_loss_ref(f2, l2)
    assert jnp.allclose(out2, ref2, atol=5e-2, rtol=5e-2), (out2, ref2)

    # TODO(synk): the explicit `mask=` input path and the labels=None identity
    # path of the PyTorch module are not implemented (only labels + 'all').
    print("KERNEL_OK")
</pallas_src>

<mosaic_0001>
module attributes {stable_mosaic.version = 11 : i64} {
  func.func @_supclu_kernel(%arg0: i32, %arg1: i32, %arg2: memref<8x32xbf16, #tpu.memory_space<vmem>>, %arg3: memref<8x32xbf16, #tpu.memory_space<vmem>>, %arg4: memref<8x1xi32, #tpu.memory_space<vmem>>, %arg5: memref<1x8xi32, #tpu.memory_space<vmem>>, %arg6: memref<8x1xf32, #tpu.memory_space<vmem>>, %arg7: memref<8x1xf32, #tpu.memory_space<vmem>>, %arg8: memref<8x1xf32, #tpu.memory_space<vmem>>, %arg9: memref<8x1xf32, #tpu.memory_space<vmem>>, %arg10: memref<8x1xf32, #tpu.memory_space<vmem>>) attributes {dimension_semantics = [#tpu.dimension_semantics<parallel>, #tpu.dimension_semantics<arbitrary>], iteration_bounds = array<i64: 1, 1>, scalar_prefetch = 0 : i64, scratch_operands = 4 : i64, tpu.core_type = #tpu.core_type<tc>, window_params = [{transform_indices = @transform_0, window_bounds = array<i64: 8, 32>}, {transform_indices = @transform_1, window_bounds = array<i64: 8, 32>}, {transform_indices = @transform_2, window_bounds = array<i64: 8, 1>}, {transform_indices = @transform_3, window_bounds = array<i64: 1, 8>}, {transform_indices = @transform_4, window_bounds = array<i64: 8, 1>}]} {
    %c0_i32 = arith.constant 0 : i32
    %0 = arith.cmpi eq, %arg1, %c0_i32 : i32
    %1 = arith.extui %0 : i1 to i32
    %c0_i32_0 = arith.constant 0 : i32
    %2 = arith.cmpi ne, %1, %c0_i32_0 : i32
    scf.if %2 {
      %cst_34 = arith.constant 0xFF800000 : f32
      %59 = vector.broadcast %cst_34 : f32 to vector<8x1xf32>
      %c0_35 = arith.constant 0 : index
      %c0_36 = arith.constant 0 : index
      %60 = vector.load %arg7[%c0_35, %c0_36] : memref<8x1xf32, #tpu.memory_space<vmem>>, vector<8x1xf32>
      tpu.vector_store %arg7[%c0_35, %c0_36], %59 {strides = array<i32>} : memref<8x1xf32, #tpu.memory_space<vmem>>, vector<8x1xf32>,
      %cst_37 = arith.constant 0.000000e+00 : f32
      %61 = vector.broadcast %cst_37 : f32 to vector<8x1xf32>
      %c0_38 = arith.constant 0 : index
      %c0_39 = arith.constant 0 : index
      %62 = vector.load %arg8[%c0_38, %c0_39] : memref<8x1xf32, #tpu.memory_space<vmem>>, vector<8x1xf32>
      tpu.vector_store %arg8[%c0_38, %c0_39], %61 {strides = array<i32>} : memref<8x1xf32, #tpu.memory_space<vmem>>, vector<8x1xf32>,
      %cst_40 = arith.constant 0.000000e+00 : f32
      %63 = vector.broadcast %cst_40 : f32 to vector<8x1xf32>
      %c0_41 = arith.constant 0 : index
      %c0_42 = arith.constant 0 : index
      %64 = vector.load %arg9[%c0_41, %c0_42] : memref<8x1xf32, #tpu.memory_space<vmem>>, vector<8x1xf32>
      tpu.vector_store %arg9[%c0_41, %c0_42], %63 {strides = array<i32>} : memref<8x1xf32, #tpu.memory_space<vmem>>, vector<8x1xf32>,
      %cst_43 = arith.constant 0.000000e+00 : f32
      %65 = vector.broadcast %cst_43 : f32 to vector<8x1xf32>
      %c0_44 = arith.constant 0 : index
      %c0_45 = arith.constant 0 : index
      %66 = vector.load %arg10[%c0_44, %c0_45] : memref<8x1xf32, #tpu.memory_space<vmem>>, vector<8x1xf32>
      tpu.vector_store %arg10[%c0_44, %c0_45], %65 {strides = array<i32>} : memref<8x1xf32, #tpu.memory_space<vmem>>, vector<8x1xf32>,
    } else {
    }
    %c0 = arith.constant 0 : index
    %c0_1 = arith.constant 0 : index
    %3 = vector.load %arg2[%c0, %c0_1] : memref<8x32xbf16, #tpu.memory_space<vmem>>, vector<8x32xbf16>
    %c0_2 = arith.constant 0 : index
    %c0_3 = arith.constant 0 : index
    %4 = vector.load %arg3[%c0_2, %c0_3] : memref<8x32xbf16, #tpu.memory_space<vmem>>, vector<8x32xbf16>
    %cst = arith.constant dense<0.000000e+00> : vector<8x8xf32>
    %5 = tpu.matmul %3, %4, %cst {dimension_numbers = #tpu.dot_dimension_numbers<[1], [1], [0], [0], [0, 0, 1, 0], [], []>} : vector<8x32xbf16>, vector<8x32xbf16>, vector<8x8xf32> -> vector<8x8xf32>
    %c8_i32 = arith.constant 8 : i32
    %6 = arith.muli %arg0, %c8_i32 : i32
    %7 = tpu.iota {dimensions = array<i32: 0>} : vector<8x8xi32>
    %8 = vector.broadcast %6 : i32 to vector<8x8xi32>
    %9 = arith.addi %8, %7 : vector<8x8xi32>
    %c8_i32_4 = arith.constant 8 : i32
    %10 = arith.muli %arg1, %c8_i32_4 : i32
    %11 = tpu.iota {dimensions = array<i32: 1>} : vector<8x8xi32>
    %12 = vector.broadcast %10 : i32 to vector<8x8xi32>
    %13 = arith.addi %12, %11 : vector<8x8xi32>
    %c8_i32_5 = arith.constant 8 : i32
    %14 = vector.broadcast %c8_i32_5 : i32 to vector<8x8xi32>
    %15 = arith.cmpi slt, %13, %14 : vector<8x8xi32>
    %16 = arith.cmpi ne, %9, %13 : vector<8x8xi32>
    %17 = arith.andi %15, %16 : vector<8x8xi1>
    %c0_6 = arith.constant 0 : index
    %c0_7 = arith.constant 0 : index
    %18 = vector.load %arg4[%c0_6, %c0_7] : memref<8x1xi32, #tpu.memory_space<vmem>>, vector<8x1xi32>
    %c0_8 = arith.constant 0 : index
    %c0_9 = arith.constant 0 : index
    %19 = vector.load %arg5[%c0_8, %c0_9] : memref<1x8xi32, #tpu.memory_space<vmem>>, vector<1x8xi32>
    %20 = vector.broadcast %18 : vector<8x1xi32> to vector<8x8xi32>
    %21 = vector.broadcast %19 : vector<1x8xi32> to vector<8x8xi32>
    %22 = arith.cmpi eq, %20, %21 : vector<8x8xi32>
    %23 = arith.andi %17, %22 : vector<8x8xi1>
    %cst_10 = arith.constant 0xFF800000 : f32
    %24 = vector.broadcast %cst_10 : f32 to vector<8x8xf32>
    %25 = arith.select %17, %5, %24 : vector<8x8xi1>, vector<8x8xf32>
    %c0_11 = arith.constant 0 : index
    %c0_12 = arith.constant 0 : index
    %26 = vector.load %arg7[%c0_11, %c0_12] : memref<8x1xf32, #tpu.memory_space<vmem>>, vector<8x1xf32>
    %cst_13 = arith.constant dense<0xFF800000> : vector<8xf32>
    %27 = vector.multi_reduction <maximumf>, %25, %cst_13 [1] : vector<8x8xf32> to vector<8xf32>
    %28 = vector.shape_cast %27 : vector<8xf32> to vector<8x1xf32>
    %29 = arith.maximumf %26, %28 : vector<8x1xf32>
    %30 = arith.subf %26, %29 : vector<8x1xf32>
    %31 = math.exp %30 : vector<8x1xf32>
    %c0_14 = arith.constant 0 : index
    %c0_15 = arith.constant 0 : index
    %32 = vector.load %arg8[%c0_14, %c0_15] : memref<8x1xf32, #tpu.memory_space<vmem>>, vector<8x1xf32>
    %33 = arith.mulf %31, %32 : vector<8x1xf32>
    %34 = vector.broadcast %29 : vector<8x1xf32> to vector<8x8xf32>
    %35 = arith.subf %25, %34 : vector<8x8xf32>
    %36 = math.exp %35 : vector<8x8xf32>
    %cst_16 = arith.constant dense<0.000000e+00> : vector<8xf32>
    %37 = vector.multi_reduction <add>, %36, %cst_16 [1] : vector<8x8xf32> to vector<8xf32>
    %38 = vector.shape_cast %37 : vector<8xf32> to vector<8x1xf32>
    %39 = arith.addf %33, %38 : vector<8x1xf32>
    %c0_17 = arith.constant 0 : index
    %c0_18 = arith.constant 0 : index
    %40 = vector.load %arg8[%c0_17, %c0_18] : memref<8x1xf32, #tpu.memory_space<vmem>>, vector<8x1xf32>
    tpu.vector_store %arg8[%c0_17, %c0_18], %39 {strides = array<i32>} : memref<8x1xf32, #tpu.memory_space<vmem>>, vector<8x1xf32>,
    %c0_19 = arith.constant 0 : index
    %c0_20 = arith.constant 0 : index
    %41 = vector.load %arg9[%c0_19, %c0_20] : memref<8x1xf32, #tpu.memory_space<vmem>>, vector<8x1xf32>
    %cst_21 = arith.constant 0.000000e+00 : f32
    %42 = vector.broadcast %cst_21 : f32 to vector<8x8xf32>
    %43 = arith.select %23, %5, %42 : vector<8x8xi1>, vector<8x8xf32>
    %cst_22 = arith.constant dense<0.000000e+00> : vector<8xf32>
    %44 = vector.multi_reduction <add>, %43, %cst_22 [1] : vector<8x8xf32> to vector<8xf32>
    %45 = vector.shape_cast %44 : vector<8xf32> to vector<8x1xf32>
    %46 = arith.addf %41, %45 : vector<8x1xf32>
    %c0_23 = arith.constant 0 : index
    %c0_24 = arith.constant 0 : index
    %47 = vector.load %arg9[%c0_23, %c0_24] : memref<8x1xf32, #tpu.memory_space<vmem>>, vector<8x1xf32>
    tpu.vector_store %arg9[%c0_23, %c0_24], %46 {strides = array<i32>} : memref<8x1xf32, #tpu.memory_space<vmem>>, vector<8x1xf32>,
    %c0_25 = arith.constant 0 : index
    %c0_26 = arith.constant 0 : index
    %48 = vector.load %arg10[%c0_25, %c0_26] : memref<8x1xf32, #tpu.memory_space<vmem>>, vector<8x1xf32>
    %49 = arith.extui %23 : vector<8x8xi1> to vector<8x8xi32>
    %50 = arith.sitofp %49 : vector<8x8xi32> to vector<8x8xf32>
    %cst_27 = arith.constant dense<0.000000e+00> : vector<8xf32>
    %51 = vector.multi_reduction <add>, %50, %cst_27 [1] : vector<8x8xf32> to vector<8xf32>
    %52 = vector.shape_cast %51 : vector<8xf32> to vector<8x1xf32>
    %53 = arith.addf %48, %52 : vector<8x1xf32>
    %c0_28 = arith.constant 0 : index
    %c0_29 = arith.constant 0 : index
    %54 = vector.load %arg10[%c0_28, %c0_29] : memref<8x1xf32, #tpu.memory_space<vmem>>, vector<8x1xf32>
    tpu.vector_store %arg10[%c0_28, %c0_29], %53 {strides = array<i32>} : memref<8x1xf32, #tpu.memory_space<vmem>>, vector<8x1xf32>,
    %c0_30 = arith.constant 0 : index
    %c0_31 = arith.constant 0 : index
    %55 = vector.load %arg7[%c0_30, %c0_31] : memref<8x1xf32, #tpu.memory_space<vmem>>, vector<8x1xf32>
    tpu.vector_store %arg7[%c0_30, %c0_31], %29 {strides = array<i32>} : memref<8x1xf32, #tpu.memory_space<vmem>>, vector<8x1xf32>,
    %c0_i32_32 = arith.constant 0 : i32
    %56 = arith.cmpi eq, %arg1, %c0_i32_32 : i32
    %57 = arith.extui %56 : i1 to i32
    %c0_i32_33 = arith.constant 0 : i32
    %58 = arith.cmpi ne, %57, %c0_i32_33 : i32
    scf.if %58 {
      %c0_34 = arith.constant 0 : index
      %c0_35 = arith.constant 0 : index
      %59 = vector.load %arg7[%c0_34, %c0_35] : memref<8x1xf32, #tpu.memory_space<vmem>>, vector<8x1xf32>
      %c0_36 = arith.constant 0 : index
      %c0_37 = arith.constant 0 : index
      %60 = vector.load %arg8[%c0_36, %c0_37] : memref<8x1xf32, #tpu.memory_space<vmem>>, vector<8x1xf32>
      %61 = math.log %60 : vector<8x1xf32>
      %62 = arith.addf %59, %61 : vector<8x1xf32>
      %c0_38 = arith.constant 0 : index
      %c0_39 = arith.constant 0 : index
      %63 = vector.load %arg9[%c0_38, %c0_39] : memref<8x1xf32, #tpu.memory_space<vmem>>, vector<8x1xf32>
      %c0_40 = arith.constant 0 : index
      %c0_41 = arith.constant 0 : index
      %64 = vector.load %arg10[%c0_40, %c0_41] : memref<8x1xf32, #tpu.memory_space<vmem>>, vector<8x1xf32>
      %65 = tpu.reciprocal %64 {approx = true} : vector<8x1xf32> -> vector<8x1xf32>
      %66 = arith.mulf %63, %65 : vector<8x1xf32>
      %67 = arith.subf %66, %62 : vector<8x1xf32>
      %c8_i32_42 = arith.constant 8 : i32
      %68 = arith.muli %arg0, %c8_i32_42 : i32
      %69 = tpu.iota {dimensions = array<i32: 0>} : vector<8x1xi32>
      %70 = vector.broadcast %68 : i32 to vector<8x1xi32>
      %71 = arith.addi %70, %69 : vector<8x1xi32>
      %c8_i32_43 = arith.constant 8 : i32
      %72 = vector.broadcast %c8_i32_43 : i32 to vector<8x1xi32>
      %73 = arith.cmpi slt, %71, %72 : vector<8x1xi32>
      %cst_44 = arith.constant -4.28571415 : f32
      %74 = vector.broadcast %cst_44 : f32 to vector<8x1xf32>
      %75 = arith.mulf %74, %67 : vector<8x1xf32>
      %cst_45 = arith.constant 0.000000e+00 : f32
      %76 = vector.broadcast %cst_45 : f32 to vector<8x1xf32>
      %77 = arith.select %73, %75, %76 : vector<8x1xi1>, vector<8x1xf32>
      %c0_46 = arith.constant 0 : index
      %c0_47 = arith.constant 0 : index
      %78 = vector.load %arg6[%c0_46, %c0_47] : memref<8x1xf32, #tpu.memory_space<vmem>>, vector<8x1xf32>
      tpu.vector_store %arg6[%c0_46, %c0_47], %77 {strides = array<i32>} : memref<8x1xf32, #tpu.memory_space<vmem>>, vector<8x1xf32>,
    } else {
    }
    return
  }
  func.func @transform_0(%arg0: i32, %arg1: i32) -> (i32, i32) {
    %c0_i32 = arith.constant 0 : i32
    %c0_i32_0 = arith.constant 0 : i32
    return %arg0, %c0_i32 : i32, i32
  }
  func.func @transform_1(%arg0: i32, %arg1: i32) -> (i32, i32) {
    %c0_i32 = arith.constant 0 : i32
    %c0_i32_0 = arith.constant 0 : i32
    return %arg1, %c0_i32 : i32, i32
  }
  func.func @transform_2(%arg0: i32, %arg1: i32) -> (i32, i32) {
    %c0_i32 = arith.constant 0 : i32
    %c0_i32_0 = arith.constant 0 : i32
    return %arg0, %c0_i32 : i32, i32
  }
  func.func @transform_3(%arg0: i32, %arg1: i32) -> (i32, i32) {
    %c0_i32 = arith.constant 0 : i32
    %c0_i32_0 = arith.constant 0 : i32
    return %c0_i32, %arg1 : i32, i32
  }
  func.func @transform_4(%arg0: i32, %arg1: i32) -> (i32, i32) {
    %c0_i32 = arith.constant 0 : i32
    %c0_i32_0 = arith.constant 0 : i32
    return %arg0, %c0_i32 : i32, i32
  }
}

</mosaic_0001>

<llo_original>
// kernel: tpu_custom_call.1
$region0: #{tpu_custom_call.1}
  #allocation0 [shape = 'u32[]', space=smem, size = 0x4, offset = 0x4, fixed_abs, tag = 'smem constant byte address 0x4 - core index']
  #allocation1 [shape = 'u32[72,128]{1,0:T(1,128)}', space=vmem, size = 0x9000, scoped, tag = 'internal scratch']
  #allocation2 [shape = 'f32[8,1]{1,0:T(8,128)}', space=vmem, size = 0x1000, scoped, tag = 'scratch operand']
  #allocation3 [shape = 'f32[8,1]{1,0:T(8,128)}', space=vmem, size = 0x1000, scoped, tag = 'scratch operand']
  #allocation4 [shape = 'f32[8,1]{1,0:T(8,128)}', space=vmem, size = 0x1000, scoped, tag = 'scratch operand']
  #allocation5 [shape = 'f32[8,1]{1,0:T(8,128)}', space=vmem, size = 0x1000, scoped, tag = 'scratch operand']
  %s0 = inlined_call_operand.vmem [shape: bf16[8,32], index: 0, kind: input, shape index: {}]
  %s1 = inlined_call_operand.vmem [shape: bf16[8,32], index: 1, kind: input, shape index: {}]
  %s2 = inlined_call_operand.vmem [shape: s32[8,1], index: 2, kind: input, shape index: {}]
  %s3 = inlined_call_operand.vmem [shape: s32[1,8], index: 3, kind: input, shape index: {}]
  %s4 = inlined_call_operand.vmem [shape: f32[8,1], index: 4, kind: output, shape index: {}]
  %s5 = sld [smem:[#allocation0]]
  $region34: #{tpu_custom_call.1} parent=0
    _
  %s7 = ssub.s32 1, %s5
  %s8 = scalar_select 0, %s7, %s5
  // Predicated region
  $region2: #{tpu_custom_call.1} parent=0 // pred_check
    _
  $region3: #{tpu_custom_call.1} parent=0 // pred_check_branch
    %10 = sbr.rel (0) target = $region5
  $region4: #{tpu_custom_call.1} parent=0 // pred_region
    _
  $region5: #{tpu_custom_call.1} parent=0 // pred_fallthru
    _
  // Predicated region
  $region6: #{tpu_custom_call.1} parent=0 // pred_check
    _
  $region7: #{tpu_custom_call.1} parent=0 // pred_check_branch
    %12 = sbr.rel (0) target = $region9
  $region8: #{tpu_custom_call.1} parent=0 // pred_region
    _
  $region9: #{tpu_custom_call.1} parent=0 // pred_fallthru
    _
  // Predicated region
  $region10: #{tpu_custom_call.1} parent=0 // pred_check
    _
  $region11: #{tpu_custom_call.1} parent=0 // pred_check_branch
    %14 = sbr.rel (0) target = $region13
  $region12: #{tpu_custom_call.1} parent=0 // pred_region
    _
  $region13: #{tpu_custom_call.1} parent=0 // pred_fallthru
    _
  // Predicated region
  $region14: #{tpu_custom_call.1} parent=0 // pred_check
    _
  $region15: #{tpu_custom_call.1} parent=0 // pred_check_branch
    %16 = sbr.rel (0) target = $region17
  $region16: #{tpu_custom_call.1} parent=0 // pred_region
    _
  $region17: #{tpu_custom_call.1} parent=0 // pred_fallthru
    _
  %p18 = scmp.eq.s32.totalorder 0, 0
  // Predicated region
  $region18: #{tpu_custom_call.1} parent=0 // pred_check
    %p19 = pneg %p18
  $region19: #{tpu_custom_call.1} parent=0 // pred_check_branch
    %21 = sbr.rel (%p19) target = $region21
  $region20: #{tpu_custom_call.1} parent=0 // pred_region
    %vm22 = vcmask 7168
    %23 = vst.msk [vmem:[#allocation2] sm:$0xff] %vm22, -inf
    %24 = vst.msk [vmem:[#allocation3] sm:$0xff] %vm22, 0.0
    %25 = vst.msk [vmem:[#allocation4] sm:$0xff] %vm22, 0.0
    %26 = vst.msk [vmem:[#allocation5] sm:$0xff] %vm22, 0.0
  $region21: #{tpu_custom_call.1} parent=0 // pred_fallthru
    _
  %v27 = vld [vmem:[%s0] sm:$0xf]
  %v28 = vld [vmem:[%s1] sm:$0xf]
  %vm29 = vcmask 261120
  %v31 = vsel %vm29, %v27, 0
  %v34 = vsel %vm29, %v28, 0
  %36 = vmatpush.bf16.xpose.msra.mxu0 0
  %37 = vmatpush.bf16.xpose.msra.mxu0 0
  %38 = vmatpush.bf16.xpose.msra.mxu0 0
  %39 = vmatpush.bf16.xpose.msra.mxu0 0
  %40 = vmatpush.bf16.xpose.msra.mxu0 0
  %41 = vmatpush.bf16.xpose.msra.mxu0 0
  %42 = vmatpush.bf16.xpose.msra.mxu0 0
  %43 = vmatpush.bf16.xpose.msra.mxu0 %v34
  %44 = vmatmul.bf16.gmra.mxu0 %v31
  %v45 = vpop.f32.mrf.mxu0
  %v46 = vadd.f32 0.0, %v45
  %v47 = vpop.f32.mrf.mxu0
  %48 = vdwg.mxu0
  %s49 = smul.u32 0, 8
  %v50 = vlaneseq
  %v51 = vshrl.u32 %v50, 7
  %v52 = vstv %s49
  %v53 = vadd.s32 %v52, %v51
  %s54 = smul.u32 0, 8
  %v55 = vlaneseq
  %v56 = vand.u32 %v55, 127
  %v57 = vstv %s54
  %v58 = vadd.s32 %v57, %v56
  %vm59 = vcmp.lt.s32.totalorder %v58, 8
  %vm60 = vcmp.ne.s32.totalorder %v53, %v58
  %vm61 = vmand %vm59, %vm60
  %v62 = vld [vmem:[%s2] sm:$0xff]
  %v63 = vld [vmem:[%s3] sm:$0x1]
  %64 = vset.pattern.permute.xlu0 0
  %65 = vperm.xlu0 %64, %v62
  %v66 = vpop.permute.xlu0 %65
  %v67 = vperm.slane %v63, 0
  %vm68 = vcmp.eq.s32.totalorder %v66, %v67
  %vm69 = vmand %vm61, %vm68
  %v70 = vsel %vm61, %v46, -inf
  %v71 = vld [vmem:[#allocation2] sm:$0xff]
  %vm72 = vcmask 64512
  %v73 = vsel %vm72, %v70, -inf
  %74 = vmax.xlane.f32.xlu0 %v73
  %v75 = vpop.xlane.xlu0 %74
  %v76 = vmax.f32 %v71, %v75
  %v77 = vsub.f32 %v71, %v76
  %v78 = vmul.f32 %v77, 1.442695
  %v79 = vpow.pop %v78
  %v80 = vld [vmem:[#allocation3] sm:$0xff]
  %v81 = vmul.f32 %v79, %v80
  %83 = vset.pattern.permute.xlu0 0
  %84 = vperm.xlu0 %83, %v76
  %v85 = vpop.permute.xlu0 %84
  %v87 = vsub.f32 %v70, %v85
  %v88 = vmul.f32 %v87, 1.442695
  %v89 = vpow.pop %v88
  %v90 = vsel %vm72, %v89, 0.0
  %91 = vadd.xlane.f32.xlu0 %v90
  %v92 = vpop.xlane.xlu0 %91
  %v93 = vadd.f32 %v81, %v92
  %vm94 = vcmask 7168
  %95 = vst.msk [vmem:[#allocation3] sm:$0xff] %vm94, %v93
  %v96 = vld [vmem:[#allocation4] sm:$0xff]
  %v97 = vsel %vm69, %v46, 0.0
  %v98 = vsel %vm72, %v97, 0.0
  %99 = vadd.xlane.f32.xlu0 %v98
  %v100 = vpop.xlane.xlu0 %99
  %v101 = vadd.f32 %v96, %v100
  %102 = vst.msk [vmem:[#allocation4] sm:$0xff] %vm94, %v101
  %v103 = vld [vmem:[#allocation5] sm:$0xff]
  %v104 = vsel %vm69, 1, 0
  %v105 = vcvt.s32.f32 %v104
  %v106 = vsel %vm72, %v105, 0.0
  %107 = vadd.xlane.f32.xlu0 %v106
  %v108 = vpop.xlane.xlu0 %107
  %v109 = vadd.f32 %v103, %v108
  %110 = vst.msk [vmem:[#allocation5] sm:$0xff] %vm94, %v109
  %111 = vst.msk [vmem:[#allocation2] sm:$0xff] %vm94, %v76
  // Predicated region
  $region22: #{tpu_custom_call.1} parent=0 // pred_check
    %p112 = pneg %p18
  $region23: #{tpu_custom_call.1} parent=0 // pred_check_branch
    %114 = sbr.rel (%p112) target = $region25
  $region24: #{tpu_custom_call.1} parent=0 // pred_region
    %v115 = vld [vmem:[#allocation2] sm:$0xff]
    %v116 = vld [vmem:[#allocation3] sm:$0xff]
    %v117 = vlog2.pop %v116
    %v118 = vmul.f32 %v117, 0.6931472
    %v119 = vadd.f32 %v115, %v118
    %v120 = vld [vmem:[#allocation4] sm:$0xff]
    %v121 = vld [vmem:[#allocation5] sm:$0xff]
    %v122 = vrcp.pop %v121
    %v123 = vmul.f32 %v120, %v122
    %v124 = vsub.f32 %v123, %v119
    %vm125 = vcmp.lt.s32.totalorder %v53, 8
    %v126 = vmul.f32 %v124, -4.285714
    %v127 = vsel %vm125, %v126, 0.0
    %128 = vst.msk [vmem:[%s4] sm:$0xff] %vm94, %v127
  $region25: #{tpu_custom_call.1} parent=0 // pred_fallthru
    _
  // Predicated region
  $region26: #{tpu_custom_call.1} parent=0 // pred_check
    _
  $region27: #{tpu_custom_call.1} parent=0 // pred_check_branch
    %130 = sbr.rel (0) target = $region29
  $region28: #{tpu_custom_call.1} parent=0 // pred_region
    _
  $region29: #{tpu_custom_call.1} parent=0 // pred_fallthru
    _
  // Predicated region
  $region30: #{tpu_custom_call.1} parent=0 // pred_check
    _
  $region31: #{tpu_custom_call.1} parent=0 // pred_check_branch
    %132 = sbr.rel (0) target = $region33
  $region32: #{tpu_custom_call.1} parent=0 // pred_region
    _
  $region33: #{tpu_custom_call.1} parent=0 // pred_fallthru
    _

</llo_original>
